<compile_context>
chip_gen: v5e
topology: v5e:2x2
jax: 0.10.0
libtpu: 0.0.40
codegen_flags: <defaults>
</compile_context>

<pallas_src>
import functools

import jax
import jax.numpy as jnp
from jax.experimental import pallas as pl
from jax.experimental.pallas import tpu as pltpu

EPS = 1e-5
_LANE = 128


# --------------------------- in-kernel helpers ------------------------------
def _scale_shift_from_stats(stats, gb, n_rows):
    """Fold training-mode BN into y = h * scale + shift (all f32)."""
    inv_n = 1.0 / n_rows
    mean = stats[0:1, :] * inv_n
    var = jnp.maximum(stats[1:2, :] * inv_n - mean * mean, 0.0)
    scale = gb[0:1, :] * jax.lax.rsqrt(var + EPS)
    shift = gb[1:2, :] - mean * scale
    return scale, shift


def _accumulate_stats(stats_ref, h):
    """Accumulate per-column (sum, sum-of-squares) across row tiles (f32)."""
    @pl.when(pl.program_id(0) == 0)
    def _():
        stats_ref[...] = jnp.zeros_like(stats_ref)

    stats_ref[...] += jnp.concatenate(
        [jnp.sum(h, axis=0, keepdims=True),
         jnp.sum(h * h, axis=0, keepdims=True)], axis=0)


# ------------------------------- kernels ------------------------------------
def _fc1_kernel(x_ref, w1_ref, h_ref, stats_ref):
    # fc1 with K=3: three VPU broadcast FMAs instead of a lane-padded MXU matmul.
    x = x_ref[...]                      # (T, 3) f32
    w1 = w1_ref[...]                    # (3, d1) f32
    h = (x[:, 0:1] * w1[0:1, :]
         + x[:, 1:2] * w1[1:2, :]
         + x[:, 2:3] * w1[2:3, :])      # bias dropped: exact no-op under batch BN
    h_ref[...] = h
    _accumulate_stats(stats_ref, h)


def _mid_layer_kernel(stats_ref, gb_ref, h_in_ref, w_ref, h_out_ref, stats_out_ref,
                      *, n_rows):
    # Normalize previous layer (one FMA/elem) + ReLU, then bf16 matmul (f32 acc),
    # then accumulate this layer's sum / sum-of-squares for the next stage's BN.
    scale, shift = _scale_shift_from_stats(stats_ref[...], gb_ref[...], n_rows)
    h = jnp.maximum(h_in_ref[...] * scale + shift, 0.0)
    out = jnp.dot(h.astype(jnp.bfloat16), w_ref[...],
                  preferred_element_type=jnp.float32)   # bias dropped (no-op under BN)
    h_out_ref[...] = out
    _accumulate_stats(stats_out_ref, out)


def _pool_head_kernel(stats_ref, gb_ref, h3_ref, wc1_ref, gbc1_ref, wc2_ref, bc2_ref,
                      out_ref, pooled_sc, *, n_rows, n_clouds):
    b = pl.program_id(0)

    # Normalize + ReLU this cloud's points, then max-pool over its N points.
    scale, shift = _scale_shift_from_stats(stats_ref[...], gb_ref[...], n_rows)
    h = jnp.maximum(h3_ref[...] * scale + shift, 0.0)          # (N, d3)
    pooled_row = jnp.max(h, axis=0, keepdims=True)             # (1, d3)

    @pl.when(b == 0)
    def _():
        pooled_sc[...] = jnp.zeros_like(pooled_sc)

    row_ids = jax.lax.broadcasted_iota(jnp.int32, (n_clouds, 1), 0)
    pooled_sc[...] = jnp.where(row_ids == b, pooled_row, pooled_sc[...])

    # Classifier head on the last grid step, once all pooled rows are resident.
    @pl.when(b == n_clouds - 1)
    def _():
        pooled = pooled_sc[...]                                 # (B, d3) f32
        c = jnp.dot(pooled.astype(jnp.bfloat16), wc1_ref[...],
                    preferred_element_type=jnp.float32)         # cls_fc1 (bias no-op)
        gbc1 = gbc1_ref[...]
        m = jnp.mean(c, axis=0, keepdims=True)
        cc = c - m
        v = jnp.mean(cc * cc, axis=0, keepdims=True)
        c = jnp.maximum(cc * (gbc1[0:1, :] * jax.lax.rsqrt(v + EPS)) + gbc1[1:2, :], 0.0)
        # TODO(synk): dropout is eval-mode identity; training-mode RNG masking
        # (pltpu.prng_seed / prng_random_bits) not implemented.
        out_ref[...] = jnp.dot(c.astype(jnp.bfloat16), wc2_ref[...],
                               preferred_element_type=jnp.float32) + bc2_ref[...]


# ------------------------------- wrapper -------------------------------------
def _pick_tile_rows(rows, max_tile=1024):
    """Largest multiple-of-8 divisor of `rows` that is <= max_tile (fallback: rows)."""
    best = None
    for t in range(8, min(rows, max_tile) + 1, 8):
        if rows % t == 0:
            best = t
    return best if best is not None else rows


def _cparams(block_bytes):
    # Explicit scoped-VMEM limit sized from resident blocks (with pipelining headroom),
    # never below the per-generation default scoped limits.
    est = 4 * block_bytes + (2 << 20)
    return pltpu.CompilerParams(
        dimension_semantics=("arbitrary",),   # resident stats / pooled accumulators
        vmem_limit_bytes=int(min(48 << 20, max(32 << 20, est))),
    )


def pointnet_forward(x, params, *, tile_rows=None):
    """x: (B, N, 3) f32; params: PyTorch-layout weights. Returns (B, num_classes) f32."""
    B, N, D = x.shape
    assert D == 3
    assert N % 8 == 0 or B == 1, "N must be a multiple of 8 (sublane-aligned per-cloud pooling)"
    rows = B * N
    f32, bf16 = jnp.float32, jnp.bfloat16

    d1 = params["w1"].shape[1]
    d2 = params["w2"].shape[1]
    d3 = params["w3"].shape[1]
    dc = params["wc1"].shape[1]
    num_classes = params["wc2"].shape[1]
    assert num_classes <= _LANE

    if tile_rows is None:
        tile_rows = _pick_tile_rows(rows)
    assert rows % tile_rows == 0 and (tile_rows % 8 == 0 or tile_rows == rows)
    num_tiles = rows // tile_rows

    x_flat = x.reshape(rows, D).astype(f32)

    # Packed per-layer BN params: row 0 = gamma, row 1 = beta.
    gb1 = jnp.concatenate([params["g1"], params["be1"]], axis=0).astype(f32)
    gb2 = jnp.concatenate([params["g2"], params["be2"]], axis=0).astype(f32)
    gb3 = jnp.concatenate([params["g3"], params["be3"]], axis=0).astype(f32)
    gbc1 = jnp.concatenate([params["gc1"], params["bec1"]], axis=0).astype(f32)

    # bf16 weights for the MXU (fc1 stays f32: it is computed on the VPU).
    w1 = params["w1"].astype(f32)
    w2 = params["w2"].astype(bf16)
    w3 = params["w3"].astype(bf16)
    wc1 = params["wc1"].astype(bf16)
    # Lane-dense classifier output: pad wc2 / bc2 to 128 columns, slice outside.
    wc2p = jnp.zeros((dc, _LANE), bf16).at[:, :num_classes].set(params["wc2"].astype(bf16))
    bc2p = jnp.zeros((1, _LANE), f32).at[:, :num_classes].set(params["bc2"].astype(f32))

    row_spec = lambda d: pl.BlockSpec((tile_rows, d), lambda i: (i, 0))
    full_spec = lambda shape: pl.BlockSpec(shape, lambda i: (0, 0))

    # ---- stage 1: fc1 (+ stats for BN1) ------------------------------------
    h1, stats1 = pl.pallas_call(
        _fc1_kernel,
        grid=(num_tiles,),
        in_specs=[row_spec(D), full_spec((D, d1))],
        out_specs=(row_spec(d1), full_spec((2, d1))),
        out_shape=(jax.ShapeDtypeStruct((rows, d1), f32),
                   jax.ShapeDtypeStruct((2, d1), f32)),
        compiler_params=_cparams(4 * tile_rows * (D + d1)),
    )(x_flat, w1)

    # ---- stages 2 & 3: BN+ReLU of previous layer, fcN, stats ---------------
    def _mid_stage(stats_in, gb, h_in, w, d_in, d_out):
        return pl.pallas_call(
            functools.partial(_mid_layer_kernel, n_rows=rows),
            grid=(num_tiles,),
            in_specs=[full_spec((2, d_in)), full_spec((2, d_in)),
                      row_spec(d_in), full_spec((d_in, d_out))],
            out_specs=(row_spec(d_out), full_spec((2, d_out))),
            out_shape=(jax.ShapeDtypeStruct((rows, d_out), f32),
                       jax.ShapeDtypeStruct((2, d_out), f32)),
            compiler_params=_cparams(4 * tile_rows * (d_in + d_out) + 2 * d_in * d_out),
        )(stats_in, gb, h_in, w)

    h2, stats2 = _mid_stage(stats1, gb1, h1, w2, d1, d2)
    h3, stats3 = _mid_stage(stats2, gb2, h2, w3, d2, d3)

    # ---- stage 4: BN3+ReLU, per-cloud max-pool, classifier head ------------
    logits_padded = pl.pallas_call(
        functools.partial(_pool_head_kernel, n_rows=rows, n_clouds=B),
        grid=(B,),
        in_specs=[full_spec((2, d3)), full_spec((2, d3)),
                  pl.BlockSpec((N, d3), lambda b: (b, 0)),
                  full_spec((d3, dc)), full_spec((2, dc)),
                  full_spec((dc, _LANE)), full_spec((1, _LANE))],
        out_specs=full_spec((B, _LANE)),
        out_shape=jax.ShapeDtypeStruct((B, _LANE), f32),
        scratch_shapes=[pltpu.VMEM((B, d3), f32)],
        compiler_params=_cparams(4 * (N * d3 + B * (d3 + _LANE)) + 2 * d3 * dc),
    )(stats3, gb3, h3, wc1, gbc1, wc2p, bc2p)

    return logits_padded[:, :num_classes]


# --------------------------- pure-JAX reference ------------------------------
def pointnet_reference(x, params, *, matmul_dtype=jnp.float32):
    """Faithful to the PyTorch module (training-mode BN, biases included).
    matmul_dtype=bf16 mirrors the kernel's mixed-precision MXU inputs for
    fc2/fc3/cls_fc1/cls_fc2 (fc1 is f32 in the kernel as well)."""
    B, N, _ = x.shape
    h = x.reshape(B * N, 3).astype(jnp.float32)

    def mm(a, w):
        return jnp.dot(a.astype(matmul_dtype), w.astype(matmul_dtype),
                       preferred_element_type=jnp.float32)

    def bn(v, g, be):
        m = jnp.mean(v, axis=0, keepdims=True)
        var = jnp.mean((v - m) ** 2, axis=0, keepdims=True)
        return (v - m) / jnp.sqrt(var + EPS) * g + be

    h = jnp.maximum(bn(h @ params["w1"] + params["b1"], params["g1"], params["be1"]), 0.0)
    h = jnp.maximum(bn(mm(h, params["w2"]) + params["b2"], params["g2"], params["be2"]), 0.0)
    h = jnp.maximum(bn(mm(h, params["w3"]) + params["b3"], params["g3"], params["be3"]), 0.0)
    pooled = jnp.max(h.reshape(B, N, -1), axis=1)
    c = jnp.maximum(bn(mm(pooled, params["wc1"]) + params["bc1"],
                       params["gc1"], params["bec1"]), 0.0)
    # dropout: eval-mode identity
    return mm(c, params["wc2"]) + params["bc2"]


def init_params(key, num_classes=3):
    dims = [(3, 64), (64, 128), (128, 256), (256, 128)]
    names = ["1", "2", "3", "c1"]
    params = {}
    keys = iter(jax.random.split(key, 32))
    for (din, dout), n in zip(dims, names):
        params[f"w{n}"] = (jax.random.normal(next(keys), (din, dout), jnp.float32)
                           / jnp.sqrt(float(din)))
        params[f"b{n}"] = 0.1 * jax.random.normal(next(keys), (1, dout), jnp.float32)
        params[f"g{n}"] = 1.0 + 0.1 * jax.random.normal(next(keys), (1, dout), jnp.float32)
        params[f"be{n}"] = 0.1 * jax.random.normal(next(keys), (1, dout), jnp.float32)
    params["wc2"] = (jax.random.normal(next(keys), (128, num_classes), jnp.float32)
                     / jnp.sqrt(128.0))
    params["bc2"] = 0.1 * jax.random.normal(next(keys), (1, num_classes), jnp.float32)
    return params


if __name__ == "__main__":
    key = jax.random.PRNGKey(0)
    kx, kp = jax.random.split(key)

    B, N, D = 8, 16, 3                   # 8 clouds x 16 points x xyz (small, aligned)
    x = jax.random.normal(kx, (B, N, D), jnp.float32)
    params = init_params(kp, num_classes=3)

    # tile_rows=32 -> 4 row tiles: exercises the tiled grid / stats-accumulator path.
    out = jax.block_until_ready(pointnet_forward(x, params, tile_rows=32))
    assert out.shape == (B, 3)

    # Mixed-precision reference (bf16 MXU inputs like the kernel, biases included,
    # which the kernel drops as an exact no-op under training-mode BN): tight match.
    ref_mixed = pointnet_reference(x, params, matmul_dtype=jnp.bfloat16)
    assert jnp.allclose(out, ref_mixed, atol=2e-2, rtol=2e-2), (out, ref_mixed)

    # Full-f32 PyTorch-faithful reference: loose tolerance covers only the bf16
    # matmul quantization.
    ref_f32 = pointnet_reference(x, params, matmul_dtype=jnp.float32)
    assert jnp.allclose(out, ref_f32, atol=2.5e-1, rtol=2.5e-1), (out, ref_f32)

    print("KERNEL_OK")
</pallas_src>

<mosaic_0001>
module attributes {stable_mosaic.version = 11 : i64} {
  func.func @_fc1_kernel(%arg0: i32, %arg1: memref<32x3xf32, #tpu.memory_space<vmem>>, %arg2: memref<3x64xf32, #tpu.memory_space<vmem>>, %arg3: memref<32x64xf32, #tpu.memory_space<vmem>>, %arg4: memref<2x64xf32, #tpu.memory_space<vmem>>) attributes {dimension_semantics = [#tpu.dimension_semantics<arbitrary>], iteration_bounds = array<i64: 4>, scalar_prefetch = 0 : i64, scratch_operands = 0 : i64, tpu.core_type = #tpu.core_type<tc>, window_params = [{transform_indices = @transform_0, window_bounds = array<i64: 32, 3>}, {pipeline_mode = #tpu.pipeline_mode<synchronous>, transform_indices = @transform_1, window_bounds = array<i64: 3, 64>}, {transform_indices = @transform_2, window_bounds = array<i64: 32, 64>}, {pipeline_mode = #tpu.pipeline_mode<synchronous>, transform_indices = @transform_3, window_bounds = array<i64: 2, 64>}]} {
    %c0 = arith.constant 0 : index
    %c0_0 = arith.constant 0 : index
    %0 = vector.load %arg1[%c0, %c0_0] : memref<32x3xf32, #tpu.memory_space<vmem>>, vector<32x3xf32>
    %c0_1 = arith.constant 0 : index
    %c0_2 = arith.constant 0 : index
    %1 = vector.load %arg2[%c0_1, %c0_2] : memref<3x64xf32, #tpu.memory_space<vmem>>, vector<3x64xf32>
    %2 = vector.extract_strided_slice %0 {offsets = [0, 0], sizes = [32, 1], strides = [1, 1]} : vector<32x3xf32> to vector<32x1xf32>
    %3 = vector.extract_strided_slice %1 {offsets = [0, 0], sizes = [1, 64], strides = [1, 1]} : vector<3x64xf32> to vector<1x64xf32>
    %4 = vector.broadcast %2 : vector<32x1xf32> to vector<32x64xf32>
    %5 = vector.broadcast %3 : vector<1x64xf32> to vector<32x64xf32>
    %6 = arith.mulf %4, %5 : vector<32x64xf32>
    %7 = vector.extract_strided_slice %0 {offsets = [0, 1], sizes = [32, 1], strides = [1, 1]} : vector<32x3xf32> to vector<32x1xf32>
    %8 = vector.extract_strided_slice %1 {offsets = [1, 0], sizes = [1, 64], strides = [1, 1]} : vector<3x64xf32> to vector<1x64xf32>
    %9 = vector.broadcast %7 : vector<32x1xf32> to vector<32x64xf32>
    %10 = vector.broadcast %8 : vector<1x64xf32> to vector<32x64xf32>
    %11 = arith.mulf %9, %10 : vector<32x64xf32>
    %12 = arith.addf %6, %11 : vector<32x64xf32>
    %13 = vector.extract_strided_slice %0 {offsets = [0, 2], sizes = [32, 1], strides = [1, 1]} : vector<32x3xf32> to vector<32x1xf32>
    %14 = vector.extract_strided_slice %1 {offsets = [2, 0], sizes = [1, 64], strides = [1, 1]} : vector<3x64xf32> to vector<1x64xf32>
    %15 = vector.broadcast %13 : vector<32x1xf32> to vector<32x64xf32>
    %16 = vector.broadcast %14 : vector<1x64xf32> to vector<32x64xf32>
    %17 = arith.mulf %15, %16 : vector<32x64xf32>
    %18 = arith.addf %12, %17 : vector<32x64xf32>
    %c0_3 = arith.constant 0 : index
    %c0_4 = arith.constant 0 : index
    %19 = vector.load %arg3[%c0_3, %c0_4] : memref<32x64xf32, #tpu.memory_space<vmem>>, vector<32x64xf32>
    tpu.vector_store %arg3[%c0_3, %c0_4], %18 {strides = array<i32>} : memref<32x64xf32, #tpu.memory_space<vmem>>, vector<32x64xf32>,
    %c0_i32 = arith.constant 0 : i32
    %20 = arith.cmpi eq, %arg0, %c0_i32 : i32
    %21 = arith.extui %20 : i1 to i32
    %c0_i32_5 = arith.constant 0 : i32
    %22 = arith.cmpi ne, %21, %c0_i32_5 : i32
    scf.if %22 {
      %cst_11 = arith.constant 0.000000e+00 : f32
      %32 = vector.broadcast %cst_11 : f32 to vector<2x64xf32>
      %c0_12 = arith.constant 0 : index
      %c0_13 = arith.constant 0 : index
      %33 = vector.load %arg4[%c0_12, %c0_13] : memref<2x64xf32, #tpu.memory_space<vmem>>, vector<2x64xf32>
      tpu.vector_store %arg4[%c0_12, %c0_13], %32 {strides = array<i32>} : memref<2x64xf32, #tpu.memory_space<vmem>>, vector<2x64xf32>,
    } else {
    }
    %c0_6 = arith.constant 0 : index
    %c0_7 = arith.constant 0 : index
    %23 = vector.load %arg4[%c0_6, %c0_7] : memref<2x64xf32, #tpu.memory_space<vmem>>, vector<2x64xf32>
    %cst = arith.constant dense<0.000000e+00> : vector<64xf32>
    %24 = vector.multi_reduction <add>, %18, %cst [0] : vector<32x64xf32> to vector<64xf32>
    %25 = vector.shape_cast %24 : vector<64xf32> to vector<1x64xf32>
    %26 = arith.mulf %18, %18 : vector<32x64xf32>
    %cst_8 = arith.constant dense<0.000000e+00> : vector<64xf32>
    %27 = vector.multi_reduction <add>, %26, %cst_8 [0] : vector<32x64xf32> to vector<64xf32>
    %28 = vector.shape_cast %27 : vector<64xf32> to vector<1x64xf32>
    %29 = tpu.concatenate %25, %28 in 0 : vector<1x64xf32>, vector<1x64xf32> -> vector<2x64xf32>
    %30 = arith.addf %23, %29 : vector<2x64xf32>
    %c0_9 = arith.constant 0 : index
    %c0_10 = arith.constant 0 : index
    %31 = vector.load %arg4[%c0_9, %c0_10] : memref<2x64xf32, #tpu.memory_space<vmem>>, vector<2x64xf32>
    tpu.vector_store %arg4[%c0_9, %c0_10], %30 {strides = array<i32>} : memref<2x64xf32, #tpu.memory_space<vmem>>, vector<2x64xf32>,
    return
  }
  func.func @transform_0(%arg0: i32) -> (i32, i32) {
    %c0_i32 = arith.constant 0 : i32
    %c0_i32_0 = arith.constant 0 : i32
    return %arg0, %c0_i32 : i32, i32
  }
  func.func @transform_1(%arg0: i32) -> (i32, i32) {
    %c0_i32 = arith.constant 0 : i32
    %c0_i32_0 = arith.constant 0 : i32
    %c0_i32_1 = arith.constant 0 : i32
    return %c0_i32, %c0_i32_0 : i32, i32
  }
  func.func @transform_2(%arg0: i32) -> (i32, i32) {
    %c0_i32 = arith.constant 0 : i32
    %c0_i32_0 = arith.constant 0 : i32
    return %arg0, %c0_i32 : i32, i32
  }
  func.func @transform_3(%arg0: i32) -> (i32, i32) {
    %c0_i32 = arith.constant 0 : i32
    %c0_i32_0 = arith.constant 0 : i32
    %c0_i32_1 = arith.constant 0 : i32
    return %c0_i32, %c0_i32_0 : i32, i32
  }
}

</mosaic_0001>

<llo_original>
// kernel: tpu_custom_call.1
$region0: #{tpu_custom_call.1}
  #allocation0 [shape = 'u32[]', space=smem, size = 0x4, offset = 0x4, fixed_abs, tag = 'smem constant byte address 0x4 - core index']
  #allocation1 [shape = 'u32[72,128]{1,0:T(1,128)}', space=vmem, size = 0x9000, scoped, tag = 'internal scratch']
  %s0 = inlined_call_operand.vmem [shape: f32[128,3], index: 0, kind: input, shape index: {}]
  %s1 = inlined_call_operand.vmem [shape: f32[3,64], index: 1, kind: input, shape index: {}]
  %s2 = inlined_call_operand.vmem [shape: f32[128,64], index: 2, kind: output, shape index: {0}]
  %s3 = inlined_call_operand.hbm [shape: f32[2,64], index: 3, kind: output, shape index: {1}]
  %4 = xla_tuple %s2, %s3
  %s5 = sld [smem:[#allocation0]]
  $region53: #{tpu_custom_call.1} parent=0
    _
  %s7 = ssub.s32 1, %s5
  %s8 = scalar_select 0, %s7, %s5
  $region1: #{tpu_custom_call.1} parent=0
    #allocation2 [shape = 'u8[1024]{0}', space=vmem, size = 0x400, scoped, tag = 'output window, operand 1, single buffered']
    #allocation3 [shape = 's32[2]{0}', space=sflag, size = 0x8, scoped, tag = 'scoped memory for tpu_custom_call.1']
    %9 = vsyncpa [#allocation3], 0
    loop: start=0, step=1, limit=6
    $region2: #{tpu_custom_call.1} parent=1 // loop_pre_header
      _
    $region3: #{tpu_custom_call.1} parent=1 // loop_header
      %s11 = sphi 0, %s15
      %p12 = scmp.ge.s32.totalorder %s11, 6
      %s21 = sphi 0, %s23
      %s24 = sphi 0, %s21
      %s25 = sphi 0, %s24
      %s41 = sphi 0, %s25
      %s45 = sphi 0, %s45
      %s47 = sphi 0, %s45
      %s48 = sphi 0, %s47
      %s62 = sphi 0, %s48
      %s68 = sphi 0, %s70
      %s71 = sphi 0, %s68
      %s72 = sphi 0, %s71
      %s88 = sphi 0, %s72
      %s92 = sphi 0, %s92
      %s94 = sphi 0, %s92
      %s95 = sphi 0, %s94
      %s109 = sphi 0, %s95
    $region4: #{tpu_custom_call.1} parent=1 // loop_header_branch
      %14 = sbr.rel (%p12) target = $region8
    $region5: #{tpu_custom_call.1} parent=1 // loop_body
      %s16 = ssub.s32 %s11, 1
      %s17 = ssub.s32 %s11, 2
      %s18 = sadd.s32 %s11, 1
      %s19 = ssub.s32 %s11, %s18
      %p20 = scmp.eq.s32.totalorder %s19, 0
      %s22 = sadd.s32 %s21, 1
      %s23 = scalar_select %p20, %s21, %s22
      %p26 = pneg %p20
      %p27 = scmp.eq.s32.totalorder %s11, 3
      %p28 = por %p26, %p27
      %p29 = scmp.ne.s32.totalorder %s21, %s24
      %p30 = scmp.eq.s32.totalorder %s11, 0
      %p31 = por %p29, %p30
      %p32 = scmp.ne.s32.totalorder %s21, %s24
      %p33 = scmp.eq.s32.totalorder %s16, 3
      %p34 = por %p32, %p33
      %p35 = scmp.ne.s32.totalorder %s24, %s25
      %p36 = scmp.eq.s32.totalorder %s16, 0
      %p37 = por %p35, %p36
      %p38 = scmp.ne.s32.totalorder %s24, %s25
      %p39 = scmp.eq.s32.totalorder %s17, 3
      %p40 = por %p38, %p39
      %p42 = scmp.ne.s32.totalorder %s25, %s41
      %p43 = scmp.eq.s32.totalorder %s17, 0
      %p44 = por %p42, %p43
      %s46 = sadd.s32 %s45, 1
      %p49 = scmp.eq.s32.totalorder %s11, 3
      %p50 = scmp.ne.s32.totalorder %s45, %s47
      %p51 = scmp.eq.s32.totalorder %s11, 0
      %p52 = por %p50, %p51
      %p53 = scmp.ne.s32.totalorder %s45, %s47
      %p54 = scmp.eq.s32.totalorder %s16, 3
      %p55 = por %p53, %p54
      %p56 = scmp.ne.s32.totalorder %s47, %s48
      %p57 = scmp.eq.s32.totalorder %s16, 0
      %p58 = por %p56, %p57
      %p59 = scmp.ne.s32.totalorder %s47, %s48
      %p60 = scmp.eq.s32.totalorder %s17, 3
      %p61 = por %p59, %p60
      %p63 = scmp.ne.s32.totalorder %s48, %s62
      %p64 = scmp.eq.s32.totalorder %s17, 0
      %p65 = por %p63, %p64
      %s66 = ssub.s32 %s11, %s18
      %p67 = scmp.eq.s32.totalorder %s66, 0
      %s69 = sadd.s32 %s68, 1
      %s70 = scalar_select %p67, %s68, %s69
      %p73 = pneg %p67
      %p74 = scmp.eq.s32.totalorder %s11, 3
      %p75 = por %p73, %p74
      %p76 = scmp.ne.s32.totalorder %s68, %s71
      %p77 = scmp.eq.s32.totalorder %s11, 0
      %p78 = por %p76, %p77
      %p79 = scmp.ne.s32.totalorder %s68, %s71
      %p80 = scmp.eq.s32.totalorder %s16, 3
      %p81 = por %p79, %p80
      %p82 = scmp.ne.s32.totalorder %s71, %s72
      %p83 = scmp.eq.s32.totalorder %s16, 0
      %p84 = por %p82, %p83
      %p85 = scmp.ne.s32.totalorder %s71, %s72
      %p86 = scmp.eq.s32.totalorder %s17, 3
      %p87 = por %p85, %p86
      %p89 = scmp.ne.s32.totalorder %s72, %s88
      %p90 = scmp.eq.s32.totalorder %s17, 0
      %p91 = por %p89, %p90
      %s93 = sadd.s32 %s92, 1
      %p96 = scmp.eq.s32.totalorder %s11, 3
      %p97 = scmp.ne.s32.totalorder %s92, %s94
      %p98 = scmp.eq.s32.totalorder %s11, 0
      %p99 = por %p97, %p98
      %p100 = scmp.ne.s32.totalorder %s92, %s94
      %p101 = scmp.eq.s32.totalorder %s16, 3
      %p102 = por %p100, %p101
      %p103 = scmp.ne.s32.totalorder %s94, %s95
      %p104 = scmp.eq.s32.totalorder %s16, 0
      %p105 = por %p103, %p104
      %p106 = scmp.ne.s32.totalorder %s94, %s95
      %p107 = scmp.eq.s32.totalorder %s17, 3
      %p108 = por %p106, %p107
      %p110 = scmp.ne.s32.totalorder %s95, %s109
      %p111 = scmp.eq.s32.totalorder %s17, 0
      %p112 = por %p110, %p111
      %p113 = scmp.le.s32.totalorder 1, %s11
      %p114 = scmp.lt.s32.totalorder %s11, 5
      %p115 = pnand %p113, %p114
      %p116 = pneg %p115
      // Predicated region
      $region9: #{tpu_custom_call.1} parent=5 // pred_check
        _
      $region10: #{tpu_custom_call.1} parent=5 // pred_check_branch
        %118 = sbr.rel (%p115) target = $region12
      $region11: #{tpu_custom_call.1} parent=5 // pred_region
        %s119 = ssub.s32 %s11, 1
        // Predicated region
        $region13: #{tpu_custom_call.1} parent=11 // pred_check
          %p120 = pneg %p58
        $region14: #{tpu_custom_call.1} parent=11 // pred_check_branch
          %122 = sbr.rel (%p120) target = $region16
        $region15: #{tpu_custom_call.1} parent=11 // pred_region
          _
        $region16: #{tpu_custom_call.1} parent=11 // pred_fallthru
          _
      $region12: #{tpu_custom_call.1} parent=5 // pred_fallthru
        _
      %p123 = scmp.lt.s32.totalorder %s11, 4
      // Predicated region
      $region17: #{tpu_custom_call.1} parent=5 // pred_check
        %p124 = pneg %p123
      $region18: #{tpu_custom_call.1} parent=5 // pred_check_branch
        %126 = sbr.rel (%p124) target = $region20
      $region19: #{tpu_custom_call.1} parent=5 // pred_region
        // Predicated region
        $region21: #{tpu_custom_call.1} parent=19 // pred_check
          %p127 = pneg %p31
        $region22: #{tpu_custom_call.1} parent=19 // pred_check_branch
          %129 = sbr.rel (%p127) target = $region24
        $region23: #{tpu_custom_call.1} parent=19 // pred_region
          %s130 = smul.u32 4, %s11
          %p131 = scmp.lt.s32.totalorder %s130, 15
          %s132 = scalar_select %p131, %s130, 15
          %s133 = smul.addr %s132, 8
          %s134 = scalar_lea.vmem %s0, %s133
          %s135 = smul.u32 4, %s11
        $region24: #{tpu_custom_call.1} parent=19 // pred_fallthru
          _
      $region20: #{tpu_custom_call.1} parent=5 // pred_fallthru
        _
      %p136 = scmp.le.s32.totalorder 1, %s11
      %p137 = scmp.lt.s32.totalorder %s11, 5
      %p138 = pnand %p136, %p137
      %p139 = pneg %p138
      // Predicated region
      $region25: #{tpu_custom_call.1} parent=5 // pred_check
        _
      $region26: #{tpu_custom_call.1} parent=5 // pred_check_branch
        %141 = sbr.rel (%p138) target = $region28
      $region27: #{tpu_custom_call.1} parent=5 // pred_region
        %s142 = ssub.s32 %s11, 1
        %s143 = smul.u32 4, %s16
        %p144 = scmp.lt.s32.totalorder %s143, 15
        %s145 = scalar_select %p144, %s143, 15
        %s146 = smul.addr %s145, 8
        %s147 = scalar_lea.vmem %s0, %s146
        %p148 = pneg %p37
        %p149 = pneg %p34
        %p150 = pneg %p58
        %p151 = pneg %p55
        %p152 = pneg %p84
        %p153 = pneg %p81
        %s154 = smul.u32 4, %s16
        %p155 = scmp.lt.s32.totalorder %s154, 15
        %s156 = scalar_select %p155, %s154, 15
        %s157 = smul.addr %s156, 8
        %s158 = scalar_lea.vmem %s2, %s157
        %p159 = pneg %p105
        %p160 = pneg %p102
        %s161 = smul.u32 4, %s16
        %p162 = scmp.lt.s32.totalorder %s161, 15
        %s163 = scalar_select %p162, %s161, 15
        %s164 = smul.addr %s163, 8
        %s165 = scalar_lea.vmem %s0, %s164
        %s166 = smul.u32 4, %s16
        %s167 = smul.u32 4, %s16
        %p168 = scmp.lt.s32.totalorder %s167, 15
        %s169 = scalar_select %p168, %s167, 15
        %s170 = smul.addr %s169, 8
        %s171 = scalar_lea.vmem %s2, %s170
        %s172 = smul.u32 4, %s16
        %v173 = vld [vmem:[%s165] sm:$0xff]
        %v174 = vld [vmem:[%s165 + $0x8] sm:$0xff]
        %v175 = vld [vmem:[%s165 + $0x10] sm:$0xff]
        %v176 = vld [vmem:[%s165 + $0x18] sm:$0xff]
        %v177 = vld [vmem:[%s1] sm:$0x7]
        %179 = vset.pattern.permute.xlu0 0
        %180 = vperm.xlu0 %179, %v173
        %v181 = vpop.permute.xlu0 %180
        %184 = vset.pattern.permute.xlu0 0
        %185 = vperm.xlu0 %184, %v174
        %v186 = vpop.permute.xlu0 %185
        %189 = vset.pattern.permute.xlu0 0
        %190 = vperm.xlu0 %189, %v175
        %v191 = vpop.permute.xlu0 %190
        %194 = vset.pattern.permute.xlu0 0
        %195 = vperm.xlu0 %194, %v176
        %v196 = vpop.permute.xlu0 %195
        %v198 = vperm.slane %v177, 0
        %v199 = vmul.f32 %v181, %v198
        %v200 = vmul.f32 %v186, %v198
        %v201 = vmul.f32 %v191, %v198
        %v202 = vmul.f32 %v196, %v198
        %203 = vset.pattern.permute.xlu0 1
        %204 = vperm.xlu0 %203, %v173
        %v205 = vpop.permute.xlu0 %204
        %207 = vset.pattern.permute.xlu0 1
        %208 = vperm.xlu0 %207, %v174
        %v209 = vpop.permute.xlu0 %208
        %211 = vset.pattern.permute.xlu0 1
        %212 = vperm.xlu0 %211, %v175
        %v213 = vpop.permute.xlu0 %212
        %215 = vset.pattern.permute.xlu0 1
        %216 = vperm.xlu0 %215, %v176
        %v217 = vpop.permute.xlu0 %216
        %v219 = vperm.slane %v177, 1
        %v220 = vmul.f32 %v205, %v219
        %v221 = vmul.f32 %v209, %v219
        %v222 = vmul.f32 %v213, %v219
        %v223 = vmul.f32 %v217, %v219
        %v224 = vadd.f32 %v199, %v220
        %v225 = vadd.f32 %v200, %v221
        %v226 = vadd.f32 %v201, %v222
        %v227 = vadd.f32 %v202, %v223
        %228 = vset.pattern.permute.xlu0 2
        %229 = vperm.xlu0 %228, %v173
        %v230 = vpop.permute.xlu0 %229
        %232 = vset.pattern.permute.xlu0 2
        %233 = vperm.xlu0 %232, %v174
        %v234 = vpop.permute.xlu0 %233
        %236 = vset.pattern.permute.xlu0 2
        %237 = vperm.xlu0 %236, %v175
        %v238 = vpop.permute.xlu0 %237
        %240 = vset.pattern.permute.xlu0 2
        %241 = vperm.xlu0 %240, %v176
        %v242 = vpop.permute.xlu0 %241
        %v244 = vperm.slane %v177, 2
        %v245 = vmul.f32 %v230, %v244
        %v246 = vmul.f32 %v234, %v244
        %v247 = vmul.f32 %v238, %v244
        %v248 = vmul.f32 %v242, %v244
        %v249 = vadd.f32 %v224, %v245
        %v250 = vadd.f32 %v225, %v246
        %v251 = vadd.f32 %v226, %v247
        %v252 = vadd.f32 %v227, %v248
        %vm253 = vcmask 523264
        %254 = vst.msk [vmem:[%s171] sm:$0xff] %vm253, %v249
        %255 = vst.msk [vmem:[%s171 + $0x8] sm:$0xff] %vm253, %v250
        %256 = vst.msk [vmem:[%s171 + $0x10] sm:$0xff] %vm253, %v251
        %257 = vst.msk [vmem:[%s171 + $0x18] sm:$0xff] %vm253, %v252
        %p258 = scmp.eq.s32.totalorder %s16, 0
        // Predicated region
        $region29: #{tpu_custom_call.1} parent=27 // pred_check
          %p259 = pneg %p258
        $region30: #{tpu_custom_call.1} parent=27 // pred_check_branch
          %261 = sbr.rel (%p259) target = $region32
        $region31: #{tpu_custom_call.1} parent=27 // pred_region
          %vm262 = vcmask 517120
          %263 = vst.msk [vmem:[#allocation2] sm:$0x3] %vm262, 0.0
        $region32: #{tpu_custom_call.1} parent=27 // pred_fallthru
          _
        %v264 = vld [vmem:[#allocation2] sm:$0x3]
        %v265 = vsel %vm253, %v249, 0.0
        %v266 = vsel %vm253, %v250, 0.0
        %v267 = vadd.f32 %v265, %v266
        %v268 = vsel %vm253, %v251, 0.0
        %v269 = vadd.f32 %v267, %v268
        %v270 = vsel %vm253, %v252, 0.0
        %v271 = vadd.f32 %v269, %v270
        %v272 = vrot.slane %v271, 4
        %v273 = vadd.f32 %v271, %v272
        %v274 = vrot.slane %v273, 2
        %v275 = vadd.f32 %v273, %v274
        %v276 = vrot.slane %v275, 1
        %v277 = vadd.f32 %v275, %v276
        %v278 = vmul.f32 %v249, %v249
        %v279 = vmul.f32 %v250, %v250
        %v280 = vmul.f32 %v251, %v251
        %v281 = vmul.f32 %v252, %v252
        %v282 = vsel %vm253, %v278, 0.0
        %v283 = vsel %vm253, %v279, 0.0
        %v284 = vadd.f32 %v282, %v283
        %v285 = vsel %vm253, %v280, 0.0
        %v286 = vadd.f32 %v284, %v285
        %v287 = vsel %vm253, %v281, 0.0
        %v288 = vadd.f32 %v286, %v287
        %v289 = vrot.slane %v288, 4
        %v290 = vadd.f32 %v288, %v289
        %v291 = vrot.slane %v290, 2
        %v292 = vadd.f32 %v290, %v291
        %v293 = vrot.slane %v292, 1
        %v294 = vadd.f32 %v292, %v293
        %vm295 = vcmask 1040384
        %v296 = vsel %vm295, %v277, %v294
        %v297 = vadd.f32 %v264, %v296
        %vm298 = vcmask 517120
        %299 = vst.msk [vmem:[#allocation2] sm:$0x3] %vm298, %v297
        %s300 = smul.u32 4, %s16
        %p301 = scmp.lt.s32.totalorder %s300, 15
        %s302 = scalar_select %p301, %s300, 15
        %s303 = smul.addr %s302, 8
        %s304 = scalar_lea.vmem %s2, %s303
        // Predicated region
        $region33: #{tpu_custom_call.1} parent=27 // pred_check
          %p305 = pneg %p81
        $region34: #{tpu_custom_call.1} parent=27 // pred_check_branch
          %307 = sbr.rel (%p305) target = $region36
        $region35: #{tpu_custom_call.1} parent=27 // pred_region
          %s308 = smul.u32 4, %s16
        $region36: #{tpu_custom_call.1} parent=27 // pred_fallthru
          _
        // Predicated region
        $region37: #{tpu_custom_call.1} parent=27 // pred_check
          %p309 = pneg %p102
        $region38: #{tpu_custom_call.1} parent=27 // pred_check_branch
          %311 = sbr.rel (%p309) target = $region40
        $region39: #{tpu_custom_call.1} parent=27 // pred_region
          %313 = vsyncadd [#allocation3], 0
          %s315 = sshll.u32 [#allocation2], 4
          %s316 = int_to_ptr.vmem [resolvable:$true] %s315
          %s317 = sshll.u32 %s3, 4
          %s318 = int_to_ptr.hbm [resolvable:$true] %s317
          %320 = dma.vmem_to_hbm [thread:$0]  %s316, 32, %s318, [#allocation3]
        $region40: #{tpu_custom_call.1} parent=27 // pred_fallthru
          _
        // Predicated region
        $region41: #{tpu_custom_call.1} parent=27 // pred_check
          %p321 = pneg %p102
        $region42: #{tpu_custom_call.1} parent=27 // pred_check_branch
          %323 = sbr.rel (%p321) target = $region44
        $region43: #{tpu_custom_call.1} parent=27 // pred_region
          %325 = dma.done [#allocation3], 32
        $region44: #{tpu_custom_call.1} parent=27 // pred_fallthru
          _
      $region28: #{tpu_custom_call.1} parent=5 // pred_fallthru
        _
      %p326 = scmp.le.s32.totalorder 2, %s11
      // Predicated region
      $region45: #{tpu_custom_call.1} parent=5 // pred_check
        %p327 = pneg %p326
      $region46: #{tpu_custom_call.1} parent=5 // pred_check_branch
        %329 = sbr.rel (%p327) target = $region48
      $region47: #{tpu_custom_call.1} parent=5 // pred_region
        %s330 = ssub.s32 %s11, 2
        // Predicated region
        $region49: #{tpu_custom_call.1} parent=47 // pred_check
          %p331 = pneg %p87
        $region50: #{tpu_custom_call.1} parent=47 // pred_check_branch
          %333 = sbr.rel (%p331) target = $region52
        $region51: #{tpu_custom_call.1} parent=47 // pred_region
          %s334 = smul.u32 4, %s17
          %p335 = scmp.lt.s32.totalorder %s334, 15
          %s336 = scalar_select %p335, %s334, 15
          %s337 = smul.addr %s336, 8
          %s338 = scalar_lea.vmem %s2, %s337
        $region52: #{tpu_custom_call.1} parent=47 // pred_fallthru
          _
      $region48: #{tpu_custom_call.1} parent=5 // pred_fallthru
        _
    $region6: #{tpu_custom_call.1} parent=1 // loop_footer
      %s15 = sadd.s32 1, %s11
    $region7: #{tpu_custom_call.1} parent=1 // loop_footer_branch
      %10 = sbr.rel target = $region3
    $region8: #{tpu_custom_call.1} parent=1 // loop_exit
      _
    %339 = vsyncpa [#allocation3], 1
    %s340 = scalar_lea.sflag [#allocation3], 1
    %341 = vsyncpa %s340, 1

</llo_original>
